<compile_context>
chip_gen: v7x
topology: tpu7x:2x2x1
jax: 0.10.0
libtpu: 0.0.40
codegen_flags: <defaults>
</compile_context>

<pallas_src>
import jax
import jax.numpy as jnp
from jax.experimental import pallas as pl
from jax.experimental.pallas import tpu as pltpu


def _round_up(x, m):
    return ((x + m - 1) // m) * m


def qhead_kernel(feat_ref, w1_ref, b1_ref, w2_ref, b2_ref, out_ref):
    # Fused layer 1 (value | adv side by side): [TB, F] @ [F, 2Hp] on the MXU,
    # f32 accumulate, bias + ReLU in f32 on the VPU.
    h = jnp.dot(feat_ref[...], w1_ref[...], preferred_element_type=jnp.float32)
    h = jnp.maximum(h + b1_ref[...], 0.0)

    # Layer 2 with the full dueling combine folded into the weights:
    #   out = value + adv - mean(adv)  ==  h @ W2' + b2'
    y = jnp.dot(h.astype(w2_ref.dtype), w2_ref[...],
                preferred_element_type=jnp.float32)
    out_ref[...] = (y + b2_ref[...]).astype(out_ref.dtype)


def pack_params(p, compute_dtype=jnp.bfloat16):
    """Pack the 8 Linear tensors into fused W1/b1 and combine-folded W2'/b2'."""
    w1v, b1v, w2v, b2v = p["w1v"], p["b1v"], p["w2v"], p["b2v"]
    w1a, b1a, w2a, b2a = p["w1a"], p["b1a"], p["w2a"], p["b2a"]
    F, H = w1v.shape
    A = w2a.shape[1]

    # Pad hidden so the fused width 2*Hp is a multiple of 128 (lane-dense h).
    Hp = _round_up(H, 64)

    w1 = jnp.zeros((F, 2 * Hp), jnp.float32)
    w1 = w1.at[:, :H].set(w1v)
    w1 = w1.at[:, Hp:Hp + H].set(w1a)
    b1 = jnp.zeros((1, 2 * Hp), jnp.float32)
    b1 = b1.at[:, :H].set(b1v)
    b1 = b1.at[:, Hp:Hp + H].set(b1a)

    # Fold value + adv - mean(adv) into a single [2Hp, A] weight + [1, A] bias.
    w2 = jnp.zeros((2 * Hp, A), jnp.float32)
    w2 = w2.at[:H, :].set(jnp.broadcast_to(w2v, (H, A)))
    w2 = w2.at[Hp:Hp + H, :].set(w2a - jnp.mean(w2a, axis=1, keepdims=True))
    b2 = (b2v + b2a - jnp.mean(b2a, axis=1, keepdims=True)).astype(jnp.float32)

    # MXU operands in compute_dtype (bf16 by default); biases stay f32.
    return w1.astype(compute_dtype), b1, w2.astype(compute_dtype), b2


def qhead_forward(feat, params, *, compute_dtype=jnp.bfloat16, max_batch_tile=1024):
    """feat: [B, F]. Returns [B, A] float32 Q-values (dueling combine applied)."""
    B, F = feat.shape
    w1, b1, w2, b2 = pack_params(params, compute_dtype)
    A = w2.shape[1]
    H2 = w1.shape[1]

    feat_c = feat.astype(compute_dtype)

    # ---- batch tiling ----------------------------------------------------
    B8 = _round_up(B, 8)
    TB = min(max_batch_tile, B8)
    # Guarantee >=2 grid steps when the batch allows it so the "parallel" axis
    # can shard across v7x's two TensorCores (harmless on v5e/v6e).
    if B8 >= 16 and pl.cdiv(B8, TB) < 2:
        TB = max(8, _round_up(pl.cdiv(B8, 2), 8))
    # Prefer a tile that divides the (8-aligned) batch: avoids the jnp.pad
    # extra HBM pass over feat and the out[:B] slice copy.
    if B8 % TB != 0:
        for cand in range(TB, max(8, TB // 2) - 1, -8):
            if B8 % cand == 0:
                TB = cand
                break
    n_tiles = pl.cdiv(B8, TB)
    B_pad = n_tiles * TB
    feat_p = feat_c if B_pad == B else jnp.pad(feat_c, ((0, B_pad - B), (0, 0)))

    # ---- VMEM budget (feat double-buffered, weights resident, h in f32) ----
    itemsize = jnp.dtype(compute_dtype).itemsize
    vmem_est = (
        2 * TB * F * itemsize                      # feat tile, double buffered
        + TB * H2 * 4                              # h intermediate (f32)
        + 2 * TB * A * 4                           # out tile, double buffered
        + 2 * (w1.size + w2.size) * itemsize       # weights (worst case 2 bufs)
        + 2 * (b1.size + b2.size) * 4              # biases
    )
    vmem_limit = int(min(64 << 20, max(16 << 20, 2 * vmem_est + (8 << 20))))

    def call(single_buffer_weights):
        if single_buffer_weights:
            def wspec(shape):
                return pl.BlockSpec(shape, lambda i: (0, 0),
                                    pipeline_mode=pl.Buffered(1))
        else:
            def wspec(shape):
                return pl.BlockSpec(shape, lambda i: (0, 0))

        return pl.pallas_call(
            qhead_kernel,
            out_shape=jax.ShapeDtypeStruct((B_pad, A), jnp.float32),
            grid=(n_tiles,),
            in_specs=[
                pl.BlockSpec((TB, F), lambda i: (i, 0)),   # feat: tiled batch
                wspec(w1.shape),                           # resident weights
                wspec(b1.shape),
                wspec(w2.shape),
                wspec(b2.shape),
            ],
            out_specs=pl.BlockSpec((TB, A), lambda i: (i, 0)),
            compiler_params=pltpu.CompilerParams(
                dimension_semantics=("parallel",),         # megacore-shard batch
                vmem_limit_bytes=vmem_limit,
            ),
        )(feat_p, w1, b1, w2, b2)

    try:
        out = call(True)
    except Exception:
        # pl.Buffered(1) single-buffering unsupported on this jax version:
        # fall back to default (double-buffered) weight pipelining.
        out = call(False)

    return out[:B] if B_pad != B else out


def init_params(key, in_features, hidden, num_actions):
    """Deterministic init mimicking torch.nn.Linear default (U(-1/sqrt(fan_in), +))."""
    ks = jax.random.split(key, 8)

    def linear(kw, kb, fan_in, fan_out):
        bound = 1.0 / jnp.sqrt(fan_in)
        w = jax.random.uniform(kw, (fan_in, fan_out), jnp.float32, -bound, bound)
        b = jax.random.uniform(kb, (1, fan_out), jnp.float32, -bound, bound)
        return w, b

    w1v, b1v = linear(ks[0], ks[1], in_features, hidden)
    w2v, b2v = linear(ks[2], ks[3], hidden, 1)
    w1a, b1a = linear(ks[4], ks[5], in_features, hidden)
    w2a, b2a = linear(ks[6], ks[7], hidden, num_actions)
    return dict(w1v=w1v, b1v=b1v, w2v=w2v, b2v=b2v,
                w1a=w1a, b1a=b1a, w2a=w2a, b2a=b2a)


def qhead_reference(feat, p):
    h_v = jnp.maximum(feat @ p["w1v"] + p["b1v"], 0.0)
    value = h_v @ p["w2v"] + p["b2v"]
    h_a = jnp.maximum(feat @ p["w1a"] + p["b1a"], 0.0)
    adv = h_a @ p["w2a"] + p["b2a"]
    return value + adv - jnp.mean(adv, axis=-1, keepdims=True)


if __name__ == "__main__":
    B, F, H, A = 8, 32, 32, 6  # batch, in_features, hidden, num_actions (small)

    key = jax.random.PRNGKey(0)
    k_feat, k_params = jax.random.split(key)
    feat = jax.random.normal(k_feat, (B, F), jnp.float32)
    params = init_params(k_params, F, H, A)

    ref = qhead_reference(feat, params)

    # f32 compute path: the weight-fold only changes fp association (~1e-7).
    out_f32 = jax.block_until_ready(
        qhead_forward(feat, params, compute_dtype=jnp.float32))
    assert out_f32.shape == (B, A)
    assert jnp.allclose(out_f32, ref, atol=1e-4, rtol=1e-5), "f32 mismatch vs reference"

    # bf16 MXU path (default, fast): looser tolerance for bf16 input rounding.
    out_bf16 = jax.block_until_ready(qhead_forward(feat, params))
    assert out_bf16.shape == (B, A)
    assert jnp.allclose(out_bf16, ref, atol=5e-2, rtol=5e-2), "bf16 mismatch vs reference"

    print("KERNEL_OK")
</pallas_src>

<mosaic_0001>
module attributes {stable_mosaic.version = 11 : i64} {
  func.func @qhead_kernel(%arg0: i32, %arg1: memref<8x32xf32, #tpu.memory_space<vmem>>, %arg2: memref<32x128xf32, #tpu.memory_space<vmem>>, %arg3: memref<1x128xf32, #tpu.memory_space<vmem>>, %arg4: memref<128x6xf32, #tpu.memory_space<vmem>>, %arg5: memref<1x6xf32, #tpu.memory_space<vmem>>, %arg6: memref<8x6xf32, #tpu.memory_space<vmem>>) attributes {dimension_semantics = [#tpu.dimension_semantics<parallel>], iteration_bounds = array<i64: 1>, scalar_prefetch = 0 : i64, scratch_operands = 0 : i64, tpu.core_type = #tpu.core_type<tc>, window_params = [{transform_indices = @transform_0, window_bounds = array<i64: 8, 32>}, {pipeline_mode = #tpu.pipeline_mode<synchronous>, transform_indices = @transform_1, window_bounds = array<i64: 32, 128>}, {pipeline_mode = #tpu.pipeline_mode<synchronous>, transform_indices = @transform_2, window_bounds = array<i64: 1, 128>}, {pipeline_mode = #tpu.pipeline_mode<synchronous>, transform_indices = @transform_3, window_bounds = array<i64: 128, 6>}, {pipeline_mode = #tpu.pipeline_mode<synchronous>, transform_indices = @transform_4, window_bounds = array<i64: 1, 6>}, {transform_indices = @transform_5, window_bounds = array<i64: 8, 6>}]} {
    %c0 = arith.constant 0 : index
    %c0_0 = arith.constant 0 : index
    %0 = vector.load %arg1[%c0, %c0_0] : memref<8x32xf32, #tpu.memory_space<vmem>>, vector<8x32xf32>
    %c0_1 = arith.constant 0 : index
    %c0_2 = arith.constant 0 : index
    %1 = vector.load %arg2[%c0_1, %c0_2] : memref<32x128xf32, #tpu.memory_space<vmem>>, vector<32x128xf32>
    %cst = arith.constant dense<0.000000e+00> : vector<8x128xf32>
    %2 = tpu.matmul %0, %1, %cst {dimension_numbers = #tpu.dot_dimension_numbers<[1], [0], [0], [1], [0, 0, 1, 1], [], []>} : vector<8x32xf32>, vector<32x128xf32>, vector<8x128xf32> -> vector<8x128xf32>
    %c0_3 = arith.constant 0 : index
    %c0_4 = arith.constant 0 : index
    %3 = vector.load %arg3[%c0_3, %c0_4] : memref<1x128xf32, #tpu.memory_space<vmem>>, vector<1x128xf32>
    %4 = vector.broadcast %3 : vector<1x128xf32> to vector<8x128xf32>
    %5 = arith.addf %2, %4 : vector<8x128xf32>
    %cst_5 = arith.constant 0.000000e+00 : f32
    %6 = vector.broadcast %cst_5 : f32 to vector<8x128xf32>
    %7 = arith.maximumf %5, %6 : vector<8x128xf32>
    %c0_6 = arith.constant 0 : index
    %c0_7 = arith.constant 0 : index
    %8 = vector.load %arg4[%c0_6, %c0_7] : memref<128x6xf32, #tpu.memory_space<vmem>>, vector<128x6xf32>
    %cst_8 = arith.constant dense<0.000000e+00> : vector<8x6xf32>
    %9 = tpu.matmul %7, %8, %cst_8 {dimension_numbers = #tpu.dot_dimension_numbers<[1], [0], [0], [1], [0, 0, 1, 1], [], []>} : vector<8x128xf32>, vector<128x6xf32>, vector<8x6xf32> -> vector<8x6xf32>
    %c0_9 = arith.constant 0 : index
    %c0_10 = arith.constant 0 : index
    %10 = vector.load %arg5[%c0_9, %c0_10] : memref<1x6xf32, #tpu.memory_space<vmem>>, vector<1x6xf32>
    %11 = vector.broadcast %10 : vector<1x6xf32> to vector<8x6xf32>
    %12 = arith.addf %9, %11 : vector<8x6xf32>
    %c0_11 = arith.constant 0 : index
    %c0_12 = arith.constant 0 : index
    %13 = vector.load %arg6[%c0_11, %c0_12] : memref<8x6xf32, #tpu.memory_space<vmem>>, vector<8x6xf32>
    tpu.vector_store %arg6[%c0_11, %c0_12], %12 {strides = array<i32>} : memref<8x6xf32, #tpu.memory_space<vmem>>, vector<8x6xf32>,
    return
  }
  func.func @transform_0(%arg0: i32) -> (i32, i32) {
    %c0_i32 = arith.constant 0 : i32
    %c0_i32_0 = arith.constant 0 : i32
    return %arg0, %c0_i32 : i32, i32
  }
  func.func @transform_1(%arg0: i32) -> (i32, i32) {
    %c0_i32 = arith.constant 0 : i32
    %c0_i32_0 = arith.constant 0 : i32
    %c0_i32_1 = arith.constant 0 : i32
    return %c0_i32, %c0_i32_0 : i32, i32
  }
  func.func @transform_2(%arg0: i32) -> (i32, i32) {
    %c0_i32 = arith.constant 0 : i32
    %c0_i32_0 = arith.constant 0 : i32
    %c0_i32_1 = arith.constant 0 : i32
    return %c0_i32, %c0_i32_0 : i32, i32
  }
  func.func @transform_3(%arg0: i32) -> (i32, i32) {
    %c0_i32 = arith.constant 0 : i32
    %c0_i32_0 = arith.constant 0 : i32
    %c0_i32_1 = arith.constant 0 : i32
    return %c0_i32, %c0_i32_0 : i32, i32
  }
  func.func @transform_4(%arg0: i32) -> (i32, i32) {
    %c0_i32 = arith.constant 0 : i32
    %c0_i32_0 = arith.constant 0 : i32
    %c0_i32_1 = arith.constant 0 : i32
    return %c0_i32, %c0_i32_0 : i32, i32
  }
  func.func @transform_5(%arg0: i32) -> (i32, i32) {
    %c0_i32 = arith.constant 0 : i32
    %c0_i32_0 = arith.constant 0 : i32
    return %arg0, %c0_i32 : i32, i32
  }
}

module attributes {stable_mosaic.version = 11 : i64} {
  func.func @qhead_kernel(%arg0: i32, %arg1: memref<8x32xf32, #tpu.memory_space<vmem>>, %arg2: memref<32x128xf32, #tpu.memory_space<vmem>>, %arg3: memref<1x128xf32, #tpu.memory_space<vmem>>, %arg4: memref<128x6xf32, #tpu.memory_space<vmem>>, %arg5: memref<1x6xf32, #tpu.memory_space<vmem>>, %arg6: memref<8x6xf32, #tpu.memory_space<vmem>>) attributes {dimension_semantics = [#tpu.dimension_semantics<parallel>], iteration_bounds = array<i64: 1>, scalar_prefetch = 0 : i64, scratch_operands = 0 : i64, tpu.core_type = #tpu.core_type<tc>, window_params = [{transform_indices = @transform_0, window_bounds = array<i64: 8, 32>}, {pipeline_mode = #tpu.pipeline_mode<synchronous>, transform_indices = @transform_1, window_bounds = array<i64: 32, 128>}, {pipeline_mode = #tpu.pipeline_mode<synchronous>, transform_indices = @transform_2, window_bounds = array<i64: 1, 128>}, {pipeline_mode = #tpu.pipeline_mode<synchronous>, transform_indices = @transform_3, window_bounds = array<i64: 128, 6>}, {pipeline_mode = #tpu.pipeline_mode<synchronous>, transform_indices = @transform_4, window_bounds = array<i64: 1, 6>}, {transform_indices = @transform_5, window_bounds = array<i64: 8, 6>}]} {
    %c0 = arith.constant 0 : index
    %c0_0 = arith.constant 0 : index
    %0 = vector.load %arg1[%c0, %c0_0] : memref<8x32xf32, #tpu.memory_space<vmem>>, vector<8x32xf32>
    %c0_1 = arith.constant 0 : index
    %c0_2 = arith.constant 0 : index
    %1 = vector.load %arg2[%c0_1, %c0_2] : memref<32x128xf32, #tpu.memory_space<vmem>>, vector<32x128xf32>
    %cst = arith.constant dense<0.000000e+00> : vector<8x128xf32>
    %2 = tpu.matmul %0, %1, %cst {dimension_numbers = #tpu.dot_dimension_numbers<[1], [0], [0], [1], [0, 0, 1, 1], [], []>} : vector<8x32xf32>, vector<32x128xf32>, vector<8x128xf32> -> vector<8x128xf32>
    %c0_3 = arith.constant 0 : index
    %c0_4 = arith.constant 0 : index
    %3 = vector.load %arg3[%c0_3, %c0_4] : memref<1x128xf32, #tpu.memory_space<vmem>>, vector<1x128xf32>
    %4 = vector.broadcast %3 : vector<1x128xf32> to vector<8x128xf32>
    %5 = arith.addf %2, %4 : vector<8x128xf32>
    %cst_5 = arith.constant 0.000000e+00 : f32
    %6 = vector.broadcast %cst_5 : f32 to vector<8x128xf32>
    %7 = arith.maximumf %5, %6 : vector<8x128xf32>
    %c0_6 = arith.constant 0 : index
    %c0_7 = arith.constant 0 : index
    %8 = vector.load %arg4[%c0_6, %c0_7] : memref<128x6xf32, #tpu.memory_space<vmem>>, vector<128x6xf32>
    %cst_8 = arith.constant dense<0.000000e+00> : vector<8x6xf32>
    %9 = tpu.matmul %7, %8, %cst_8 {dimension_numbers = #tpu.dot_dimension_numbers<[1], [0], [0], [1], [0, 0, 1, 1], [], []>} : vector<8x128xf32>, vector<128x6xf32>, vector<8x6xf32> -> vector<8x6xf32>
    %c0_9 = arith.constant 0 : index
    %c0_10 = arith.constant 0 : index
    %10 = vector.load %arg5[%c0_9, %c0_10] : memref<1x6xf32, #tpu.memory_space<vmem>>, vector<1x6xf32>
    %11 = vector.broadcast %10 : vector<1x6xf32> to vector<8x6xf32>
    %12 = arith.addf %9, %11 : vector<8x6xf32>
    %c0_11 = arith.constant 0 : index
    %c0_12 = arith.constant 0 : index
    %13 = vector.load %arg6[%c0_11, %c0_12] : memref<8x6xf32, #tpu.memory_space<vmem>>, vector<8x6xf32>
    tpu.vector_store %arg6[%c0_11, %c0_12], %12 {strides = array<i32>} : memref<8x6xf32, #tpu.memory_space<vmem>>, vector<8x6xf32>,
    return
  }
  func.func @transform_0(%arg0: i32) -> (i32, i32) {
    %c0_i32 = arith.constant 0 : i32
    %c0_i32_0 = arith.constant 0 : i32
    return %arg0, %c0_i32 : i32, i32
  }
  func.func @transform_1(%arg0: i32) -> (i32, i32) {
    %c0_i32 = arith.constant 0 : i32
    %c0_i32_0 = arith.constant 0 : i32
    %c0_i32_1 = arith.constant 0 : i32
    return %c0_i32, %c0_i32_0 : i32, i32
  }
  func.func @transform_2(%arg0: i32) -> (i32, i32) {
    %c0_i32 = arith.constant 0 : i32
    %c0_i32_0 = arith.constant 0 : i32
    %c0_i32_1 = arith.constant 0 : i32
    return %c0_i32, %c0_i32_0 : i32, i32
  }
  func.func @transform_3(%arg0: i32) -> (i32, i32) {
    %c0_i32 = arith.constant 0 : i32
    %c0_i32_0 = arith.constant 0 : i32
    %c0_i32_1 = arith.constant 0 : i32
    return %c0_i32, %c0_i32_0 : i32, i32
  }
  func.func @transform_4(%arg0: i32) -> (i32, i32) {
    %c0_i32 = arith.constant 0 : i32
    %c0_i32_0 = arith.constant 0 : i32
    %c0_i32_1 = arith.constant 0 : i32
    return %c0_i32, %c0_i32_0 : i32, i32
  }
  func.func @transform_5(%arg0: i32) -> (i32, i32) {
    %c0_i32 = arith.constant 0 : i32
    %c0_i32_0 = arith.constant 0 : i32
    return %arg0, %c0_i32 : i32, i32
  }
}

</mosaic_0001>

<llo_original>
// kernel: tpu_custom_call.1
$region0: #{tpu_custom_call.1}
  #allocation0 [shape = 'u32[]', space=smem, size = 0x4, offset = 0x4, fixed_abs, tag = 'smem constant byte address 0x4 - core index']
  #allocation1 [shape = 'u32[144,128]{1,0:T(1,128)}', space=vmem, size = 0x12000, scoped, tag = 'internal scratch']
  %s0 = inlined_call_operand.vmem [shape: f32[8,32], index: 0, kind: input, shape index: {}]
  %s1 = inlined_call_operand.vmem [shape: f32[32,128], index: 1, kind: input, shape index: {}]
  %s2 = inlined_call_operand.vmem [shape: f32[1,128], index: 2, kind: input, shape index: {}]
  %s3 = inlined_call_operand.vmem [shape: f32[128,6], index: 3, kind: input, shape index: {}]
  %s4 = inlined_call_operand.vmem [shape: f32[1,6], index: 4, kind: input, shape index: {}]
  %s5 = inlined_call_operand.hbm [shape: f32[8,6], index: 5, kind: output, shape index: {}]
  %s6 = sld [smem:[#allocation0]]
  $region30: #{tpu_custom_call.1} parent=0
    _
  %s8 = ssub.s32 1, %s6
  %s9 = scalar_select 0, %s8, %s6
  $region1: #{tpu_custom_call.1} parent=0
    #allocation2 [shape = 'u8[4096]{0}', space=vmem, size = 0x1000, scoped, tag = 'output window, operand 0, single buffered']
    #allocation3 [shape = 's32[1]{0}', space=sflag, size = 0x4, scoped, tag = 'scoped memory for tpu_custom_call.1']
    %10 = vsyncpa [#allocation3], 0
    // Predicated region
    $region2: #{tpu_custom_call.1} parent=1 // pred_check
      _
    $region3: #{tpu_custom_call.1} parent=1 // pred_check_branch
      %12 = sbr.rel (0) target = $region5
    $region4: #{tpu_custom_call.1} parent=1 // pred_region
      _
    $region5: #{tpu_custom_call.1} parent=1 // pred_fallthru
      _
    // Predicated region
    $region6: #{tpu_custom_call.1} parent=1 // pred_check
      _
    $region7: #{tpu_custom_call.1} parent=1 // pred_check_branch
      %14 = sbr.rel (0) target = $region9
    $region8: #{tpu_custom_call.1} parent=1 // pred_region
      _
    $region9: #{tpu_custom_call.1} parent=1 // pred_fallthru
      _
    // Predicated region
    $region10: #{tpu_custom_call.1} parent=1 // pred_check
      _
    $region11: #{tpu_custom_call.1} parent=1 // pred_check_branch
      %16 = sbr.rel (0) target = $region13
    $region12: #{tpu_custom_call.1} parent=1 // pred_region
      _
    $region13: #{tpu_custom_call.1} parent=1 // pred_fallthru
      _
    // Predicated region
    $region14: #{tpu_custom_call.1} parent=1 // pred_check
      _
    $region15: #{tpu_custom_call.1} parent=1 // pred_check_branch
      %18 = sbr.rel (0) target = $region17
    $region16: #{tpu_custom_call.1} parent=1 // pred_region
      _
    $region17: #{tpu_custom_call.1} parent=1 // pred_fallthru
      _
    // Predicated region
    $region18: #{tpu_custom_call.1} parent=1 // pred_check
      _
    $region19: #{tpu_custom_call.1} parent=1 // pred_check_branch
      %20 = sbr.rel (0) target = $region21
    $region20: #{tpu_custom_call.1} parent=1 // pred_region
      _
    $region21: #{tpu_custom_call.1} parent=1 // pred_fallthru
      _
    %v21 = vld [vmem:[%s0] sm:$0xff]
    %v22 = vld [vmem:[%s1] sm:$0xff]
    %v23 = vld [vmem:[%s1 + $0x8] sm:$0xff]
    %v24 = vld [vmem:[%s1 + $0x10] sm:$0xff]
    %v25 = vld [vmem:[%s1 + $0x18] sm:$0xff]
    %v26 = vld [vmem:[%s2] sm:$0x1]
    %v28 = vlaneseq
    %v29 = vshrl.u32 %v28, 7
    %v30 = vsub.s32 0, %v29
    %v31 = vrot.slane %v26, %v30
    %vm33 = vcmask 261120
    %v35 = vsel %vm33, %v21, 0
    %37 = vmatprep.subr.mxu0 0.0
    %38 = vmatpush1.msra.mxu0 %v22
    %39 = vmatprep.subr.mxu0 0.0
    %40 = vmatpush1.msra.mxu0 %v23
    %41 = vmatprep.subr.mxu0 0.0
    %42 = vmatpush1.msra.mxu0 %v24
    %43 = vmatprep.subr.mxu0 0.0
    %44 = vmatpush1.msra.mxu0 %v25
    %45 = vmatprep.subr.mxu0 0.0
    %46 = vmatpush1.msra.mxu0 0.0
    %47 = vmatprep.subr.mxu0 0.0
    %48 = vmatpush1.msra.mxu0 0.0
    %49 = vmatprep.subr.mxu0 0.0
    %50 = vmatpush1.msra.mxu0 0.0
    %51 = vmatprep.subr.mxu0 0.0
    %52 = vmatpush1.msra.mxu0 0.0
    %53 = vmatprep.subr.mxu0 0.0
    %54 = vmatpush1.msra.mxu0 0.0
    %55 = vmatprep.subr.mxu0 0.0
    %56 = vmatpush1.msra.mxu0 0.0
    %57 = vmatprep.subr.mxu0 0.0
    %58 = vmatpush1.msra.mxu0 0.0
    %59 = vmatprep.subr.mxu0 0.0
    %60 = vmatpush1.msra.mxu0 0.0
    %61 = vmatprep.subr.mxu0 0.0
    %62 = vmatpush1.msra.mxu0 0.0
    %63 = vmatprep.subr.mxu0 0.0
    %64 = vmatpush1.msra.mxu0 0.0
    %65 = vmatprep.subr.mxu0 0.0
    %66 = vmatpush1.msra.mxu0 0.0
    %67 = vmatprep.subr.mxu0 0.0
    %68 = vmatpush1.msra.mxu0 0.0
    %69 = vmatprep.subr.mxu0 0.0
    %70 = vmatpush1.msra.mxu0 0.0
    %71 = vmatprep.subr.mxu0 0.0
    %72 = vmatpush1.msra.mxu0 0.0
    %73 = vmatprep.subr.mxu0 0.0
    %74 = vmatpush1.msra.mxu0 0.0
    %75 = vmatprep.subr.mxu0 0.0
    %76 = vmatpush1.msra.mxu0 0.0
    %77 = vmatprep.subr.mxu0 0.0
    %78 = vmatpush1.msra.mxu0 0.0
    %79 = vmatprep.subr.mxu0 0.0
    %80 = vmatpush1.msra.mxu0 0.0
    %81 = vmatprep.subr.mxu0 0.0
    %82 = vmatpush1.msra.mxu0 0.0
    %83 = vmatprep.subr.mxu0 0.0
    %84 = vmatpush1.msra.mxu0 0.0
    %85 = vmatprep.subr.mxu0 0.0
    %86 = vmatpush1.msra.mxu0 0.0
    %87 = vmatprep.subr.mxu0 0.0
    %88 = vmatpush1.msra.mxu0 0.0
    %89 = vmatprep.subr.mxu0 0.0
    %90 = vmatpush1.msra.mxu0 0.0
    %91 = vmatprep.subr.mxu0 0.0
    %92 = vmatpush1.msra.mxu0 0.0
    %93 = vmatprep.subr.mxu0 0.0
    %94 = vmatpush1.msra.mxu0 0.0
    %95 = vmatprep.subr.mxu0 0.0
    %96 = vmatpush1.msra.mxu0 0.0
    %97 = vmatprep.subr.mxu0 0.0
    %98 = vmatpush1.msra.mxu0 0.0
    %99 = vmatprep.subr.mxu0 0.0
    %100 = vmatpush1.msra.mxu0 0.0
    %101 = vmatprep.mubr.f32.mxu0 0.0
    %102 = vmatmul.mubr.f32.gmra.mrb[0].mxu0 %v35
    %v103 = vpop.f32.mrb[0].mxu0
    %v104 = vadd.f32 %v31, %v103
    %v105 = vpop.f32.mrb[0].mxu0
    %106 = vdwg.mxu0
    %v107 = vmax.f32 %v104, 0.0
    %v108 = vld [vmem:[%s3] sm:$0xff]
    %v109 = vld [vmem:[%s3 + $0x8] sm:$0xff]
    %v110 = vld [vmem:[%s3 + $0x10] sm:$0xff]
    %v111 = vld [vmem:[%s3 + $0x18] sm:$0xff]
    %v112 = vld [vmem:[%s3 + $0x20] sm:$0xff]
    %v113 = vld [vmem:[%s3 + $0x28] sm:$0xff]
    %v114 = vld [vmem:[%s3 + $0x30] sm:$0xff]
    %v115 = vld [vmem:[%s3 + $0x38] sm:$0xff]
    %v116 = vld [vmem:[%s3 + $0x40] sm:$0xff]
    %v117 = vld [vmem:[%s3 + $0x48] sm:$0xff]
    %v118 = vld [vmem:[%s3 + $0x50] sm:$0xff]
    %v119 = vld [vmem:[%s3 + $0x58] sm:$0xff]
    %v120 = vld [vmem:[%s3 + $0x60] sm:$0xff]
    %v121 = vld [vmem:[%s3 + $0x68] sm:$0xff]
    %v122 = vld [vmem:[%s3 + $0x70] sm:$0xff]
    %v123 = vld [vmem:[%s3 + $0x78] sm:$0xff]
    %v124 = vld [vmem:[%s4] sm:$0x1]
    %v126 = vlaneseq
    %v127 = vshrl.u32 %v126, 7
    %v128 = vsub.s32 0, %v127
    %v129 = vrot.slane %v124, %v128
    %131 = vmatprep.subr.mxu0 0.0
    %132 = vmatpush1.msra.mxu0 %v108
    %133 = vmatprep.subr.mxu0 0.0
    %134 = vmatpush1.msra.mxu0 %v109
    %135 = vmatprep.subr.mxu0 0.0
    %136 = vmatpush1.msra.mxu0 %v110
    %137 = vmatprep.subr.mxu0 0.0
    %138 = vmatpush1.msra.mxu0 %v111
    %139 = vmatprep.subr.mxu0 0.0
    %140 = vmatpush1.msra.mxu0 %v112
    %141 = vmatprep.subr.mxu0 0.0
    %142 = vmatpush1.msra.mxu0 %v113
    %143 = vmatprep.subr.mxu0 0.0
    %144 = vmatpush1.msra.mxu0 %v114
    %145 = vmatprep.subr.mxu0 0.0
    %146 = vmatpush1.msra.mxu0 %v115
    %147 = vmatprep.subr.mxu0 0.0
    %148 = vmatpush1.msra.mxu0 %v116
    %149 = vmatprep.subr.mxu0 0.0
    %150 = vmatpush1.msra.mxu0 %v117
    %151 = vmatprep.subr.mxu0 0.0
    %152 = vmatpush1.msra.mxu0 %v118
    %153 = vmatprep.subr.mxu0 0.0
    %154 = vmatpush1.msra.mxu0 %v119
    %155 = vmatprep.subr.mxu0 0.0
    %156 = vmatpush1.msra.mxu0 %v120
    %157 = vmatprep.subr.mxu0 0.0
    %158 = vmatpush1.msra.mxu0 %v121
    %159 = vmatprep.subr.mxu0 0.0
    %160 = vmatpush1.msra.mxu0 %v122
    %161 = vmatprep.subr.mxu0 0.0
    %162 = vmatpush1.msra.mxu0 %v123
    %163 = vmatprep.subr.mxu0 0.0
    %164 = vmatpush1.msra.mxu0 0.0
    %165 = vmatprep.subr.mxu0 0.0
    %166 = vmatpush1.msra.mxu0 0.0
    %167 = vmatprep.subr.mxu0 0.0
    %168 = vmatpush1.msra.mxu0 0.0
    %169 = vmatprep.subr.mxu0 0.0
    %170 = vmatpush1.msra.mxu0 0.0
    %171 = vmatprep.subr.mxu0 0.0
    %172 = vmatpush1.msra.mxu0 0.0
    %173 = vmatprep.subr.mxu0 0.0
    %174 = vmatpush1.msra.mxu0 0.0
    %175 = vmatprep.subr.mxu0 0.0
    %176 = vmatpush1.msra.mxu0 0.0
    %177 = vmatprep.subr.mxu0 0.0
    %178 = vmatpush1.msra.mxu0 0.0
    %179 = vmatprep.subr.mxu0 0.0
    %180 = vmatpush1.msra.mxu0 0.0
    %181 = vmatprep.subr.mxu0 0.0
    %182 = vmatpush1.msra.mxu0 0.0
    %183 = vmatprep.subr.mxu0 0.0
    %184 = vmatpush1.msra.mxu0 0.0
    %185 = vmatprep.subr.mxu0 0.0
    %186 = vmatpush1.msra.mxu0 0.0
    %187 = vmatprep.subr.mxu0 0.0
    %188 = vmatpush1.msra.mxu0 0.0
    %189 = vmatprep.subr.mxu0 0.0
    %190 = vmatpush1.msra.mxu0 0.0
    %191 = vmatprep.subr.mxu0 0.0
    %192 = vmatpush1.msra.mxu0 0.0
    %193 = vmatprep.subr.mxu0 0.0
    %194 = vmatpush1.msra.mxu0 0.0
    %195 = vmatprep.mubr.f32.mxu0 0.0
    %196 = vmatmul.mubr.f32.gmra.mrb[0].mxu0 %v107
    %v197 = vpop.f32.mrb[0].mxu0
    %v198 = vadd.f32 %v129, %v197
    %v199 = vpop.f32.mrb[0].mxu0
    %200 = vdwg.mxu0
    %vm201 = vcmask 48128
    %202 = vst.msk [vmem:[#allocation2] sm:$0xff] %vm201, %v198
    // Predicated region
    $region22: #{tpu_custom_call.1} parent=1 // pred_check
      _
    $region23: #{tpu_custom_call.1} parent=1 // pred_check_branch
      %204 = sbr.rel (0) target = $region25
    $region24: #{tpu_custom_call.1} parent=1 // pred_region
      %s206 = ssub.s32 128, 128
      %207 = vsyncadd [#allocation3], %s206
      %s209 = sshll.u32 [#allocation2], 4
      %s210 = int_to_ptr.vmem [resolvable:$true] %s209
      %212 = dma.vmem_to_hbm [thread:$0]  %s210, 128, %s5, [#allocation3]
    $region25: #{tpu_custom_call.1} parent=1 // pred_fallthru
      _
    // Predicated region
    $region26: #{tpu_custom_call.1} parent=1 // pred_check
      _
    $region27: #{tpu_custom_call.1} parent=1 // pred_check_branch
      %214 = sbr.rel (0) target = $region29
    $region28: #{tpu_custom_call.1} parent=1 // pred_region
      %215 = dma.done [#allocation3], 128
    $region29: #{tpu_custom_call.1} parent=1 // pred_fallthru
      _
    %216 = vsyncpa [#allocation3], 1

// kernel: tpu_custom_call.1
$region0: #{tpu_custom_call.1}
  #allocation0 [shape = 'u32[]', space=smem, size = 0x4, offset = 0x4, fixed_abs, tag = 'smem constant byte address 0x4 - core index']
  #allocation1 [shape = 'u32[144,128]{1,0:T(1,128)}', space=vmem, size = 0x12000, scoped, tag = 'internal scratch']
  %s0 = inlined_call_operand.vmem [shape: f32[8,32], index: 0, kind: input, shape index: {}]
  %s1 = inlined_call_operand.vmem [shape: f32[32,128], index: 1, kind: input, shape index: {}]
  %s2 = inlined_call_operand.vmem [shape: f32[1,128], index: 2, kind: input, shape index: {}]
  %s3 = inlined_call_operand.vmem [shape: f32[128,6], index: 3, kind: input, shape index: {}]
  %s4 = inlined_call_operand.vmem [shape: f32[1,6], index: 4, kind: input, shape index: {}]
  %s5 = inlined_call_operand.hbm [shape: f32[8,6], index: 5, kind: output, shape index: {}]
  %s6 = sld [smem:[#allocation0]]
  $region30: #{tpu_custom_call.1} parent=0
    _
  %s8 = ssub.s32 1, %s6
  %s9 = scalar_select 0, %s8, %s6
  $region1: #{tpu_custom_call.1} parent=0
    #allocation2 [shape = 'u8[4096]{0}', space=vmem, size = 0x1000, scoped, tag = 'output window, operand 0, single buffered']
    #allocation3 [shape = 's32[1]{0}', space=sflag, size = 0x4, scoped, tag = 'scoped memory for tpu_custom_call.1']
    %10 = vsyncpa [#allocation3], 0
    // Predicated region
    $region2: #{tpu_custom_call.1} parent=1 // pred_check
      _
    $region3: #{tpu_custom_call.1} parent=1 // pred_check_branch
      %12 = sbr.rel (0) target = $region5
    $region4: #{tpu_custom_call.1} parent=1 // pred_region
      _
    $region5: #{tpu_custom_call.1} parent=1 // pred_fallthru
      _
    // Predicated region
    $region6: #{tpu_custom_call.1} parent=1 // pred_check
      _
    $region7: #{tpu_custom_call.1} parent=1 // pred_check_branch
      %14 = sbr.rel (0) target = $region9
    $region8: #{tpu_custom_call.1} parent=1 // pred_region
      _
    $region9: #{tpu_custom_call.1} parent=1 // pred_fallthru
      _
    // Predicated region
    $region10: #{tpu_custom_call.1} parent=1 // pred_check
      _
    $region11: #{tpu_custom_call.1} parent=1 // pred_check_branch
      %16 = sbr.rel (0) target = $region13
    $region12: #{tpu_custom_call.1} parent=1 // pred_region
      _
    $region13: #{tpu_custom_call.1} parent=1 // pred_fallthru
      _
    // Predicated region
    $region14: #{tpu_custom_call.1} parent=1 // pred_check
      _
    $region15: #{tpu_custom_call.1} parent=1 // pred_check_branch
      %18 = sbr.rel (0) target = $region17
    $region16: #{tpu_custom_call.1} parent=1 // pred_region
      _
    $region17: #{tpu_custom_call.1} parent=1 // pred_fallthru
      _
    // Predicated region
    $region18: #{tpu_custom_call.1} parent=1 // pred_check
      _
    $region19: #{tpu_custom_call.1} parent=1 // pred_check_branch
      %20 = sbr.rel (0) target = $region21
    $region20: #{tpu_custom_call.1} parent=1 // pred_region
      _
    $region21: #{tpu_custom_call.1} parent=1 // pred_fallthru
      _
    %v21 = vld [vmem:[%s0] sm:$0xff]
    %v22 = vld [vmem:[%s1] sm:$0xff]
    %v23 = vld [vmem:[%s1 + $0x8] sm:$0xff]
    %v24 = vld [vmem:[%s1 + $0x10] sm:$0xff]
    %v25 = vld [vmem:[%s1 + $0x18] sm:$0xff]
    %v26 = vld [vmem:[%s2] sm:$0x1]
    %v28 = vlaneseq
    %v29 = vshrl.u32 %v28, 7
    %v30 = vsub.s32 0, %v29
    %v31 = vrot.slane %v26, %v30
    %vm33 = vcmask 261120
    %v35 = vsel %vm33, %v21, 0
    %37 = vmatprep.subr.mxu0 0.0
    %38 = vmatpush1.msra.mxu0 %v22
    %39 = vmatprep.subr.mxu0 0.0
    %40 = vmatpush1.msra.mxu0 %v23
    %41 = vmatprep.subr.mxu0 0.0
    %42 = vmatpush1.msra.mxu0 %v24
    %43 = vmatprep.subr.mxu0 0.0
    %44 = vmatpush1.msra.mxu0 %v25
    %45 = vmatprep.subr.mxu0 0.0
    %46 = vmatpush1.msra.mxu0 0.0
    %47 = vmatprep.subr.mxu0 0.0
    %48 = vmatpush1.msra.mxu0 0.0
    %49 = vmatprep.subr.mxu0 0.0
    %50 = vmatpush1.msra.mxu0 0.0
    %51 = vmatprep.subr.mxu0 0.0
    %52 = vmatpush1.msra.mxu0 0.0
    %53 = vmatprep.subr.mxu0 0.0
    %54 = vmatpush1.msra.mxu0 0.0
    %55 = vmatprep.subr.mxu0 0.0
    %56 = vmatpush1.msra.mxu0 0.0
    %57 = vmatprep.subr.mxu0 0.0
    %58 = vmatpush1.msra.mxu0 0.0
    %59 = vmatprep.subr.mxu0 0.0
    %60 = vmatpush1.msra.mxu0 0.0
    %61 = vmatprep.subr.mxu0 0.0
    %62 = vmatpush1.msra.mxu0 0.0
    %63 = vmatprep.subr.mxu0 0.0
    %64 = vmatpush1.msra.mxu0 0.0
    %65 = vmatprep.subr.mxu0 0.0
    %66 = vmatpush1.msra.mxu0 0.0
    %67 = vmatprep.subr.mxu0 0.0
    %68 = vmatpush1.msra.mxu0 0.0
    %69 = vmatprep.subr.mxu0 0.0
    %70 = vmatpush1.msra.mxu0 0.0
    %71 = vmatprep.subr.mxu0 0.0
    %72 = vmatpush1.msra.mxu0 0.0
    %73 = vmatprep.subr.mxu0 0.0
    %74 = vmatpush1.msra.mxu0 0.0
    %75 = vmatprep.subr.mxu0 0.0
    %76 = vmatpush1.msra.mxu0 0.0
    %77 = vmatprep.subr.mxu0 0.0
    %78 = vmatpush1.msra.mxu0 0.0
    %79 = vmatprep.subr.mxu0 0.0
    %80 = vmatpush1.msra.mxu0 0.0
    %81 = vmatprep.subr.mxu0 0.0
    %82 = vmatpush1.msra.mxu0 0.0
    %83 = vmatprep.subr.mxu0 0.0
    %84 = vmatpush1.msra.mxu0 0.0
    %85 = vmatprep.subr.mxu0 0.0
    %86 = vmatpush1.msra.mxu0 0.0
    %87 = vmatprep.subr.mxu0 0.0
    %88 = vmatpush1.msra.mxu0 0.0
    %89 = vmatprep.subr.mxu0 0.0
    %90 = vmatpush1.msra.mxu0 0.0
    %91 = vmatprep.subr.mxu0 0.0
    %92 = vmatpush1.msra.mxu0 0.0
    %93 = vmatprep.subr.mxu0 0.0
    %94 = vmatpush1.msra.mxu0 0.0
    %95 = vmatprep.subr.mxu0 0.0
    %96 = vmatpush1.msra.mxu0 0.0
    %97 = vmatprep.subr.mxu0 0.0
    %98 = vmatpush1.msra.mxu0 0.0
    %99 = vmatprep.subr.mxu0 0.0
    %100 = vmatpush1.msra.mxu0 0.0
    %101 = vmatprep.mubr.f32.mxu0 0.0
    %102 = vmatmul.mubr.f32.gmra.mrb[0].mxu0 %v35
    %v103 = vpop.f32.mrb[0].mxu0
    %v104 = vadd.f32 %v31, %v103
    %v105 = vpop.f32.mrb[0].mxu0
    %106 = vdwg.mxu0
    %v107 = vmax.f32 %v104, 0.0
    %v108 = vld [vmem:[%s3] sm:$0xff]
    %v109 = vld [vmem:[%s3 + $0x8] sm:$0xff]
    %v110 = vld [vmem:[%s3 + $0x10] sm:$0xff]
    %v111 = vld [vmem:[%s3 + $0x18] sm:$0xff]
    %v112 = vld [vmem:[%s3 + $0x20] sm:$0xff]
    %v113 = vld [vmem:[%s3 + $0x28] sm:$0xff]
    %v114 = vld [vmem:[%s3 + $0x30] sm:$0xff]
    %v115 = vld [vmem:[%s3 + $0x38] sm:$0xff]
    %v116 = vld [vmem:[%s3 + $0x40] sm:$0xff]
    %v117 = vld [vmem:[%s3 + $0x48] sm:$0xff]
    %v118 = vld [vmem:[%s3 + $0x50] sm:$0xff]
    %v119 = vld [vmem:[%s3 + $0x58] sm:$0xff]
    %v120 = vld [vmem:[%s3 + $0x60] sm:$0xff]
    %v121 = vld [vmem:[%s3 + $0x68] sm:$0xff]
    %v122 = vld [vmem:[%s3 + $0x70] sm:$0xff]
    %v123 = vld [vmem:[%s3 + $0x78] sm:$0xff]
    %v124 = vld [vmem:[%s4] sm:$0x1]
    %v126 = vlaneseq
    %v127 = vshrl.u32 %v126, 7
    %v128 = vsub.s32 0, %v127
    %v129 = vrot.slane %v124, %v128
    %131 = vmatprep.subr.mxu0 0.0
    %132 = vmatpush1.msra.mxu0 %v108
    %133 = vmatprep.subr.mxu0 0.0
    %134 = vmatpush1.msra.mxu0 %v109
    %135 = vmatprep.subr.mxu0 0.0
    %136 = vmatpush1.msra.mxu0 %v110
    %137 = vmatprep.subr.mxu0 0.0
    %138 = vmatpush1.msra.mxu0 %v111
    %139 = vmatprep.subr.mxu0 0.0
    %140 = vmatpush1.msra.mxu0 %v112
    %141 = vmatprep.subr.mxu0 0.0
    %142 = vmatpush1.msra.mxu0 %v113
    %143 = vmatprep.subr.mxu0 0.0
    %144 = vmatpush1.msra.mxu0 %v114
    %145 = vmatprep.subr.mxu0 0.0
    %146 = vmatpush1.msra.mxu0 %v115
    %147 = vmatprep.subr.mxu0 0.0
    %148 = vmatpush1.msra.mxu0 %v116
    %149 = vmatprep.subr.mxu0 0.0
    %150 = vmatpush1.msra.mxu0 %v117
    %151 = vmatprep.subr.mxu0 0.0
    %152 = vmatpush1.msra.mxu0 %v118
    %153 = vmatprep.subr.mxu0 0.0
    %154 = vmatpush1.msra.mxu0 %v119
    %155 = vmatprep.subr.mxu0 0.0
    %156 = vmatpush1.msra.mxu0 %v120
    %157 = vmatprep.subr.mxu0 0.0
    %158 = vmatpush1.msra.mxu0 %v121
    %159 = vmatprep.subr.mxu0 0.0
    %160 = vmatpush1.msra.mxu0 %v122
    %161 = vmatprep.subr.mxu0 0.0
    %162 = vmatpush1.msra.mxu0 %v123
    %163 = vmatprep.subr.mxu0 0.0
    %164 = vmatpush1.msra.mxu0 0.0
    %165 = vmatprep.subr.mxu0 0.0
    %166 = vmatpush1.msra.mxu0 0.0
    %167 = vmatprep.subr.mxu0 0.0
    %168 = vmatpush1.msra.mxu0 0.0
    %169 = vmatprep.subr.mxu0 0.0
    %170 = vmatpush1.msra.mxu0 0.0
    %171 = vmatprep.subr.mxu0 0.0
    %172 = vmatpush1.msra.mxu0 0.0
    %173 = vmatprep.subr.mxu0 0.0
    %174 = vmatpush1.msra.mxu0 0.0
    %175 = vmatprep.subr.mxu0 0.0
    %176 = vmatpush1.msra.mxu0 0.0
    %177 = vmatprep.subr.mxu0 0.0
    %178 = vmatpush1.msra.mxu0 0.0
    %179 = vmatprep.subr.mxu0 0.0
    %180 = vmatpush1.msra.mxu0 0.0
    %181 = vmatprep.subr.mxu0 0.0
    %182 = vmatpush1.msra.mxu0 0.0
    %183 = vmatprep.subr.mxu0 0.0
    %184 = vmatpush1.msra.mxu0 0.0
    %185 = vmatprep.subr.mxu0 0.0
    %186 = vmatpush1.msra.mxu0 0.0
    %187 = vmatprep.subr.mxu0 0.0
    %188 = vmatpush1.msra.mxu0 0.0
    %189 = vmatprep.subr.mxu0 0.0
    %190 = vmatpush1.msra.mxu0 0.0
    %191 = vmatprep.subr.mxu0 0.0
    %192 = vmatpush1.msra.mxu0 0.0
    %193 = vmatprep.subr.mxu0 0.0
    %194 = vmatpush1.msra.mxu0 0.0
    %195 = vmatprep.mubr.f32.mxu0 0.0
    %196 = vmatmul.mubr.f32.gmra.mrb[0].mxu0 %v107
    %v197 = vpop.f32.mrb[0].mxu0
    %v198 = vadd.f32 %v129, %v197
    %v199 = vpop.f32.mrb[0].mxu0
    %200 = vdwg.mxu0
    %vm201 = vcmask 48128
    %202 = vst.msk [vmem:[#allocation2] sm:$0xff] %vm201, %v198
    // Predicated region
    $region22: #{tpu_custom_call.1} parent=1 // pred_check
      _
    $region23: #{tpu_custom_call.1} parent=1 // pred_check_branch
      %204 = sbr.rel (0) target = $region25
    $region24: #{tpu_custom_call.1} parent=1 // pred_region
      %s206 = ssub.s32 128, 128
      %207 = vsyncadd [#allocation3], %s206
      %s209 = sshll.u32 [#allocation2], 4
      %s210 = int_to_ptr.vmem [resolvable:$true] %s209
      %212 = dma.vmem_to_hbm [thread:$0]  %s210, 128, %s5, [#allocation3]
    $region25: #{tpu_custom_call.1} parent=1 // pred_fallthru
      _
    // Predicated region
    $region26: #{tpu_custom_call.1} parent=1 // pred_check
      _
    $region27: #{tpu_custom_call.1} parent=1 // pred_check_branch
      %214 = sbr.rel (0) target = $region29
    $region28: #{tpu_custom_call.1} parent=1 // pred_region
      %215 = dma.done [#allocation3], 128
    $region29: #{tpu_custom_call.1} parent=1 // pred_fallthru
      _
    %216 = vsyncpa [#allocation3], 1

</llo_original>
